<compile_context>
chip_gen: v7x
topology: tpu7x:2x2x1
jax: 0.10.0
libtpu: 0.0.40
codegen_flags: <defaults>
</compile_context>

<pallas_src>
import jax
import jax.numpy as jnp
from jax.experimental import pallas as pl
from jax.experimental.pallas import tpu as pltpu


def _copy_kernel(x_ref, o_ref):
    # The entire forward pass is `return x`; the copy kernel is a straight
    # VMEM tile copy, fully hidden behind the HBM DMAs.
    o_ref[...] = x_ref[...]


_LANE_CHOICES = (4096, 2048, 1024, 512, 256, 128)
_TARGET_TILE_BYTES = 8 * 1024 * 1024   # 8 MiB tiles: 4 live buffers = 32 MiB,
                                       # safe on v5e/v6e (128 MiB) and v7x (64 MiB)
_VMEM_LIMIT_BYTES = 48 * 1024 * 1024   # explicit: v5e scoped default is 16 MiB


def _sublane_pack(dtype) -> int:
    # Sub-32-bit dtypes pack along sublanes: f32 -> 8, bf16 -> 16, int8/fp8 -> 32.
    return max(8, 32 // jnp.dtype(dtype).itemsize)


def _tiled_copy_2d(x2: jax.Array) -> jax.Array:
    """Lane-dense streaming copy of a (rows, lanes) array with lanes % 128 == 0."""
    rows, lanes = x2.shape
    itemsize = jnp.dtype(x2.dtype).itemsize
    sub = _sublane_pack(x2.dtype)

    tile_rows = _TARGET_TILE_BYTES // (lanes * itemsize)
    tile_rows = max(sub, (tile_rows // sub) * sub)
    tile_rows = min(tile_rows, rows)

    if tile_rows == rows and rows >= 2 * sub:
        # Whole array would fit in one tile: split into >= 2 tiles so the
        # "parallel" grid axis lets v7x's two TensorCores both stream rows.
        half = (rows + 1) // 2
        tile_rows = min(rows, ((half + sub - 1) // sub) * sub)

    if tile_rows != rows and tile_rows % sub != 0:
        tile_rows = rows  # safety: block must be sublane-aligned or full-extent

    grid = (pl.cdiv(rows, tile_rows),)
    return pl.pallas_call(
        _copy_kernel,
        out_shape=jax.ShapeDtypeStruct((rows, lanes), x2.dtype),
        grid=grid,
        in_specs=[pl.BlockSpec((tile_rows, lanes), lambda i: (i, 0))],
        out_specs=pl.BlockSpec((tile_rows, lanes), lambda i: (i, 0)),
        compiler_params=pltpu.CompilerParams(
            dimension_semantics=("parallel",),
            vmem_limit_bytes=_VMEM_LIMIT_BYTES,
        ),
    )(x2)


def _identity_copy_pallas(x: jax.Array) -> jax.Array:
    """Materialize a fresh copy of x with a tiled, lane-dense Pallas kernel."""
    orig_shape = x.shape
    total = x.size
    if total == 0:
        return x

    flat = x.reshape(total)

    lanes = next((c for c in _LANE_CHOICES if total % c == 0), None)
    if lanes is not None:
        return _tiled_copy_2d(flat.reshape(total // lanes, lanes)).reshape(orig_shape)

    # Element count not a multiple of 128: tile the 128-divisible bulk (keeps
    # pipelining and VMEM bounded for large arrays) and copy the <128-element
    # tail with a tiny second pallas_call.
    bulk = (total // 128) * 128
    if bulk == 0:
        out = pl.pallas_call(
            _copy_kernel,
            out_shape=jax.ShapeDtypeStruct((1, total), x.dtype),
        )(flat.reshape(1, total))
        return out.reshape(orig_shape)

    head = _tiled_copy_2d(flat[:bulk].reshape(bulk // 128, 128)).reshape(bulk)
    tail = pl.pallas_call(
        _copy_kernel,
        out_shape=jax.ShapeDtypeStruct((1, total - bulk), x.dtype),
    )(flat[bulk:].reshape(1, total - bulk)).reshape(total - bulk)
    return jnp.concatenate([head, tail]).reshape(orig_shape)


def identity(x: jax.Array, *, materialize: bool = False) -> jax.Array:
    """Identity forward pass.

    Fast path (default) is `return x`: zero HBM traffic, exactly the PyTorch
    module's semantics. Set materialize=True to force a fresh buffer via the
    Pallas streaming-copy kernel (unaliased plain copy: 2x bytes of HBM traffic).
    """
    if not materialize:
        return x
    return _identity_copy_pallas(x)


if __name__ == "__main__":
    key = jax.random.PRNGKey(0)
    # Small NCHW input consistent with a conv-style module.
    x = jax.random.normal(key, (2, 4, 16, 16), dtype=jnp.float32)
    expected = jnp.array(x, copy=True)

    # Fast path — the actual module semantics (no kernel, no copy).
    y_fast = identity(x)

    # Pallas streaming-copy path — exercised once so the kernel compiles & runs.
    y_kernel = identity(x, materialize=True)
    jax.block_until_ready((y_fast, y_kernel))

    assert y_fast.shape == expected.shape and y_fast.dtype == expected.dtype
    assert y_kernel.shape == expected.shape and y_kernel.dtype == expected.dtype
    assert bool(jnp.all(y_fast == expected))
    assert bool(jnp.all(y_kernel == expected))
    print("KERNEL_OK")
</pallas_src>

<mosaic_0001>
module attributes {stable_mosaic.version = 11 : i64} {
  func.func @_copy_kernel(%arg0: i32, %arg1: memref<1x2048xf32, #tpu.memory_space<vmem>>, %arg2: memref<1x2048xf32, #tpu.memory_space<vmem>>) attributes {dimension_semantics = [#tpu.dimension_semantics<parallel>], iteration_bounds = array<i64: 1>, scalar_prefetch = 0 : i64, scratch_operands = 0 : i64, tpu.core_type = #tpu.core_type<tc>, window_params = [{transform_indices = @transform_0, window_bounds = array<i64: 1, 2048>}, {transform_indices = @transform_1, window_bounds = array<i64: 1, 2048>}]} {
    %c0 = arith.constant 0 : index
    %c0_0 = arith.constant 0 : index
    %0 = vector.load %arg1[%c0, %c0_0] : memref<1x2048xf32, #tpu.memory_space<vmem>>, vector<1x2048xf32>
    %c0_1 = arith.constant 0 : index
    %c0_2 = arith.constant 0 : index
    %1 = vector.load %arg2[%c0_1, %c0_2] : memref<1x2048xf32, #tpu.memory_space<vmem>>, vector<1x2048xf32>
    tpu.vector_store %arg2[%c0_1, %c0_2], %0 {strides = array<i32>} : memref<1x2048xf32, #tpu.memory_space<vmem>>, vector<1x2048xf32>,
    return
  }
  func.func @transform_0(%arg0: i32) -> (i32, i32) {
    %c0_i32 = arith.constant 0 : i32
    %c0_i32_0 = arith.constant 0 : i32
    return %arg0, %c0_i32 : i32, i32
  }
  func.func @transform_1(%arg0: i32) -> (i32, i32) {
    %c0_i32 = arith.constant 0 : i32
    %c0_i32_0 = arith.constant 0 : i32
    return %arg0, %c0_i32 : i32, i32
  }
}

</mosaic_0001>

<llo_original>
// kernel: tpu_custom_call.1
$region0: #{tpu_custom_call.1}
  #allocation0 [shape = 'u32[]', space=smem, size = 0x4, offset = 0x4, fixed_abs, tag = 'smem constant byte address 0x4 - core index']
  #allocation1 [shape = 'u32[144,128]{1,0:T(1,128)}', space=vmem, size = 0x12000, scoped, tag = 'internal scratch']
  %s0 = inlined_call_operand.hbm [shape: f32[1,2048], index: 0, kind: input, shape index: {}]
  %s1 = inlined_call_operand.hbm [shape: f32[1,2048], index: 1, kind: output, shape index: {}]
  %s2 = sld [smem:[#allocation0]]
  $region18: #{tpu_custom_call.1} parent=0
    _
  %s4 = ssub.s32 1, %s2
  %s5 = scalar_select 0, %s4, %s2
  $region1: #{tpu_custom_call.1} parent=0
    #allocation2 [shape = 'u8[8192]{0}', space=vmem, size = 0x2000, scoped, tag = 'input window, operand 0, single buffered']
    #allocation3 [shape = 's32[1]{0}', space=sflag, size = 0x4, scoped, tag = 'scoped memory for tpu_custom_call.1']
    #allocation4 [shape = 's32[1]{0}', space=sflag, size = 0x4, scoped, tag = 'scoped memory for tpu_custom_call.1']
    #allocation5 [shape = 'u8[8192]{0}', space=vmem, size = 0x2000, scoped, tag = 'output window, operand 0, single buffered']
    %6 = vsyncpa [#allocation3], 0
    %7 = vsyncpa [#allocation4], 0
    // Predicated region
    $region2: #{tpu_custom_call.1} parent=1 // pred_check
      _
    $region3: #{tpu_custom_call.1} parent=1 // pred_check_branch
      %9 = sbr.rel (0) target = $region5
    $region4: #{tpu_custom_call.1} parent=1 // pred_region
      %s11 = ssub.s32 256, 256
      %12 = vsyncadd [#allocation3], %s11
      %s14 = sshll.u32 [#allocation2], 4
      %s15 = int_to_ptr.vmem [resolvable:$true] %s14
      %17 = dma.hbm_to_vmem [thread:$0]  %s0, 256, %s15, [#allocation3]
    $region5: #{tpu_custom_call.1} parent=1 // pred_fallthru
      _
    // Predicated region
    $region6: #{tpu_custom_call.1} parent=1 // pred_check
      _
    $region7: #{tpu_custom_call.1} parent=1 // pred_check_branch
      %19 = sbr.rel (0) target = $region9
    $region8: #{tpu_custom_call.1} parent=1 // pred_region
      %20 = dma.done [#allocation3], 256
    $region9: #{tpu_custom_call.1} parent=1 // pred_fallthru
      _
    %v21 = vld [vmem:[#allocation2] sm:$0xff]
    %v22 = vld [vmem:[#allocation2 + $0x8] sm:$0xff]
    %23 = vst [vmem:[#allocation5] sm:$0xff] %v21
    %24 = vst [vmem:[#allocation5 + $0x8] sm:$0xff] %v22
    // Predicated region
    $region10: #{tpu_custom_call.1} parent=1 // pred_check
      _
    $region11: #{tpu_custom_call.1} parent=1 // pred_check_branch
      %26 = sbr.rel (0) target = $region13
    $region12: #{tpu_custom_call.1} parent=1 // pred_region
      %s28 = ssub.s32 256, 256
      %29 = vsyncadd [#allocation4], %s28
      %s31 = sshll.u32 [#allocation5], 4
      %s32 = int_to_ptr.vmem [resolvable:$true] %s31
      %34 = dma.vmem_to_hbm [thread:$0]  %s32, 256, %s1, [#allocation4]
    $region13: #{tpu_custom_call.1} parent=1 // pred_fallthru
      _
    // Predicated region
    $region14: #{tpu_custom_call.1} parent=1 // pred_check
      _
    $region15: #{tpu_custom_call.1} parent=1 // pred_check_branch
      %36 = sbr.rel (0) target = $region17
    $region16: #{tpu_custom_call.1} parent=1 // pred_region
      %37 = dma.done [#allocation4], 256
    $region17: #{tpu_custom_call.1} parent=1 // pred_fallthru
      _
    %38 = vsyncpa [#allocation3], 1
    %39 = vsyncpa [#allocation4], 1

</llo_original>
